<compile_context>
chip_gen: v7x
topology: tpu7x:2x2x1
jax: 0.10.0
libtpu: 0.0.40
codegen_flags: <defaults>
</compile_context>

<pallas_src>
import functools

import jax
import jax.numpy as jnp
import numpy as np
from jax.experimental import pallas as pl
from jax.experimental.pallas import tpu as pltpu


def _yolo_kernel(gxy_ref, x_ref, boxes_ref, confs_ref, *, scale_x_y, anchor_wh,
                 w_cells, h_cells):
    """Per-(batch, lane-tile) YOLO decode over all anchors.

    gxy_ref   : VMEM (2, LT) f32   -> row 0: grid_x, row 1: grid_y
    x_ref     : VMEM (1, A, 5+C, LT) raw network outputs (native dtype)
    boxes_ref : VMEM (1, A, 4, LT)   -> rows (bx1, by1, bx2, by2)
    confs_ref : VMEM (1, A, C, LT)   -> sigmoid(cls) * sigmoid(obj)
    """
    x = x_ref[0].astype(jnp.float32)            # (A, 5+C, LT), cast after load
    sig = jax.nn.sigmoid(x)                      # full-vreg EUP over all rows
    ewh = jnp.exp(x[:, 2:4, :])                  # (A, 2, LT)

    gx = gxy_ref[0:1, :]                         # (1, LT)
    gy = gxy_ref[1:2, :]

    sxy = jnp.float32(scale_x_y)
    off = jnp.float32(0.5 * (scale_x_y - 1.0))
    w = jnp.float32(w_cells)
    h = jnp.float32(h_cells)

    for a, (aw, ah) in enumerate(anchor_wh):     # static unroll, A is small
        bx = (sig[a, 0:1, :] * sxy - off + gx) / w
        by = (sig[a, 1:2, :] * sxy - off + gy) / h
        bw = ewh[a, 0:1, :] * jnp.float32(aw) / w
        bh = ewh[a, 1:2, :] * jnp.float32(ah) / h
        bx1 = bx - bw * 0.5
        by1 = by - bh * 0.5
        boxes_ref[0, a, 0:1, :] = bx1
        boxes_ref[0, a, 1:2, :] = by1
        boxes_ref[0, a, 2:3, :] = bx1 + bw
        boxes_ref[0, a, 3:4, :] = by1 + bh
        confs_ref[0, a] = sig[a, 5:, :] * sig[a, 4:5, :]


def yolo_layer_forward(output, *, anchor_mask, num_classes, anchors, num_anchors,
                       stride, scale_x_y=1.0, channel_major_output=False,
                       lane_block_bytes=6 * 1024 * 1024):
    """JAX/Pallas equivalent of YoloLayer.forward (model_out post-processing).

    channel_major_output=False (default): PyTorch layouts
        boxes (B, A*HW, 1, 4), confs (B, A*HW, C).
    channel_major_output=True: kernel-native lane-dense layouts
        boxes (B, A, 4, HW), confs (B, A, C, HW) -- no extra HBM passes.
    """
    B, Cch, H, W = output.shape
    A = len(anchor_mask)
    C = num_classes
    assert Cch == A * (5 + C)
    HW = H * W

    # Masked anchors are pure config -> baked into the kernel as constants.
    anchor_step = len(anchors) // num_anchors
    anchor_wh = tuple(
        (float(anchors[m * anchor_step + 0]) / stride,
         float(anchors[m * anchor_step + 1]) / stride)
        for m in anchor_mask)

    # Lane-tile selection: multiple of 128, sized so each grid step moves
    # roughly `lane_block_bytes` of in+out data (double-buffered this stays
    # far below the v7x 64 MiB VMEM budget).
    in_bytes = jnp.dtype(output.dtype).itemsize
    bytes_per_lane = A * ((5 + C) * in_bytes + (4 + C) * 4) + 2 * 4
    lt_cap = max(128, (lane_block_bytes // bytes_per_lane) // 128 * 128)
    hw128 = ((HW + 127) // 128) * 128
    LT = int(min(hw128, lt_cap))
    HW_pad = ((HW + LT - 1) // LT) * LT
    T = HW_pad // LT

    # Channel-major view of the NCHW head: (B, A, 5+C, HW) -- a free reshape.
    x = output.reshape(B, A, 5 + C, HW)
    if HW_pad != HW:
        x = jnp.pad(x, ((0, 0), (0, 0), (0, 0), (0, HW_pad - HW)))

    # Constant grid-offset table (hoists int div/mod out of the kernel).
    gx = jnp.tile(jnp.arange(W, dtype=jnp.float32), (H,))      # gx[s] = s %  W
    gy = jnp.repeat(jnp.arange(H, dtype=jnp.float32), W)       # gy[s] = s // W
    grid_xy = jnp.stack([gx, gy], axis=0)                      # (2, HW)
    if HW_pad != HW:
        grid_xy = jnp.pad(grid_xy, ((0, 0), (0, HW_pad - HW)))

    kernel = functools.partial(_yolo_kernel, scale_x_y=float(scale_x_y),
                               anchor_wh=anchor_wh, w_cells=W, h_cells=H)

    boxes_cm, confs_cm = pl.pallas_call(
        kernel,
        out_shape=(jax.ShapeDtypeStruct((B, A, 4, HW_pad), jnp.float32),
                   jax.ShapeDtypeStruct((B, A, C, HW_pad), jnp.float32)),
        grid_spec=pltpu.PrefetchScalarGridSpec(
            num_scalar_prefetch=0,
            grid=(B, T),
            in_specs=[
                pl.BlockSpec((2, LT), lambda b, t: (0, t)),
                pl.BlockSpec((1, A, 5 + C, LT), lambda b, t: (b, 0, 0, t)),
            ],
            out_specs=(
                pl.BlockSpec((1, A, 4, LT), lambda b, t: (b, 0, 0, t)),
                pl.BlockSpec((1, A, C, LT), lambda b, t: (b, 0, 0, t)),
            ),
        ),
        compiler_params=pltpu.CompilerParams(
            dimension_semantics=("parallel", "parallel"),
            vmem_limit_bytes=48 * 1024 * 1024),
    )(grid_xy, x)

    if channel_major_output:
        # Lane-dense fast path for a TPU-side consumer (e.g. fused NMS).
        return boxes_cm[..., :HW], confs_cm[..., :HW]

    # PyTorch-compatible layouts.  This transpose is the only remaining extra
    # HBM pass; prefer channel_major_output=True when the consumer can take
    # the channel-major layout directly.
    boxes = jnp.swapaxes(boxes_cm, 2, 3)[:, :, :HW, :].reshape(B, A * HW, 1, 4)
    confs = jnp.swapaxes(confs_cm, 2, 3)[:, :, :HW, :].reshape(B, A * HW, C)
    return boxes, confs


def yolo_reference_numpy(output, *, anchor_mask, num_classes, anchors,
                         num_anchors, stride, scale_x_y=1.0):
    """Pure-numpy port of YoloLayer._yolo_forward_dynamic for verification."""
    out = np.asarray(output, dtype=np.float32)
    B, _, H, W = out.shape
    A = len(anchor_mask)
    anchor_step = len(anchors) // num_anchors
    masked = []
    for m in anchor_mask:
        masked += anchors[m * anchor_step:(m + 1) * anchor_step]
    masked = [av / stride for av in masked]

    out = out.reshape(B, A, 5 + num_classes, H, W)
    sig = lambda z: 1.0 / (1.0 + np.exp(-z))
    gx = np.tile(np.arange(W, dtype=np.float32)[None, :], (H, 1))
    gy = np.tile(np.arange(H, dtype=np.float32)[:, None], (1, W))

    boxes_list, confs_list = [], []
    for i in range(A):
        bx = (sig(out[:, i, 0]) * scale_x_y - 0.5 * (scale_x_y - 1) + gx) / W
        by = (sig(out[:, i, 1]) * scale_x_y - 0.5 * (scale_x_y - 1) + gy) / H
        bw = np.exp(out[:, i, 2]) * masked[2 * i] / W
        bh = np.exp(out[:, i, 3]) * masked[2 * i + 1] / H
        det = sig(out[:, i, 4]).reshape(B, H * W, 1)
        cls = sig(out[:, i, 5:]).reshape(B, num_classes, H * W).transpose(0, 2, 1)
        bx1 = bx - bw * 0.5
        by1 = by - bh * 0.5
        bx2 = bx1 + bw
        by2 = by1 + bh
        box = np.stack([bx1, by1, bx2, by2], axis=-1).reshape(B, H * W, 1, 4)
        boxes_list.append(box)
        confs_list.append(cls * det)
    return np.concatenate(boxes_list, axis=1), np.concatenate(confs_list, axis=1)


if __name__ == "__main__":
    # small, deterministic example consistent with the module
    B, H, W = 2, 16, 16
    num_classes = 4
    anchor_mask = [0, 1, 2]
    num_anchors_total = 9
    anchors = [12, 16, 19, 36, 40, 28, 36, 75, 76, 55, 72, 146,
               142, 110, 192, 243, 459, 401]
    stride = 8
    A = len(anchor_mask)
    Cch = A * (5 + num_classes)
    cfg = dict(anchor_mask=anchor_mask, num_classes=num_classes, anchors=anchors,
               num_anchors=num_anchors_total, stride=stride, scale_x_y=1.0)

    key = jax.random.PRNGKey(0)
    x = jax.random.normal(key, (B, Cch, H, W), dtype=jnp.float32)

    # --- f32, PyTorch-layout path (reference check) ---
    boxes, confs = yolo_layer_forward(x, **cfg)
    jax.block_until_ready((boxes, confs))
    assert boxes.shape == (B, A * H * W, 1, 4)
    assert confs.shape == (B, A * H * W, num_classes)

    ref_boxes, ref_confs = yolo_reference_numpy(np.asarray(x), **cfg)
    np.testing.assert_allclose(np.asarray(boxes), ref_boxes, rtol=1e-5, atol=1e-5)
    np.testing.assert_allclose(np.asarray(confs), ref_confs, rtol=1e-5, atol=1e-5)

    # --- bf16 input (native-dtype path: no wrapper cast, kernel casts) ---
    xb = x.astype(jnp.bfloat16)
    boxes_b, confs_b = yolo_layer_forward(xb, **cfg)
    jax.block_until_ready((boxes_b, confs_b))
    ref_boxes_b, ref_confs_b = yolo_reference_numpy(
        np.asarray(xb.astype(jnp.float32)), **cfg)
    np.testing.assert_allclose(np.asarray(boxes_b), ref_boxes_b, rtol=1e-4, atol=1e-4)
    np.testing.assert_allclose(np.asarray(confs_b), ref_confs_b, rtol=1e-4, atol=1e-4)

    # --- channel-major fast path (no post-kernel transpose) ---
    bcm, ccm = yolo_layer_forward(x, **cfg, channel_major_output=True)
    jax.block_until_ready((bcm, ccm))
    assert bcm.shape == (B, A, 4, H * W)
    assert ccm.shape == (B, A, num_classes, H * W)
    np.testing.assert_allclose(
        np.transpose(np.asarray(bcm), (0, 1, 3, 2)).reshape(B, A * H * W, 1, 4),
        np.asarray(boxes), rtol=1e-6, atol=1e-6)
    np.testing.assert_allclose(
        np.transpose(np.asarray(ccm), (0, 1, 3, 2)).reshape(B, A * H * W, num_classes),
        np.asarray(confs), rtol=1e-6, atol=1e-6)

    print("KERNEL_OK")
</pallas_src>

<mosaic_0001>
module attributes {stable_mosaic.version = 11 : i64} {
  func.func @_yolo_kernel(%arg0: i32, %arg1: i32, %arg2: memref<2x256xf32, #tpu.memory_space<vmem>>, %arg3: memref<1x3x9x256xf32, #tpu.memory_space<vmem>>, %arg4: memref<1x3x4x256xf32, #tpu.memory_space<vmem>>, %arg5: memref<1x3x4x256xf32, #tpu.memory_space<vmem>>) attributes {dimension_semantics = [#tpu.dimension_semantics<parallel>, #tpu.dimension_semantics<parallel>], iteration_bounds = array<i64: 2, 1>, scalar_prefetch = 0 : i64, scratch_operands = 0 : i64, tpu.core_type = #tpu.core_type<tc>, window_params = [{transform_indices = @transform_0, window_bounds = array<i64: 2, 256>}, {transform_indices = @transform_1, window_bounds = array<i64: 1, 3, 9, 256>}, {transform_indices = @transform_2, window_bounds = array<i64: 1, 3, 4, 256>}, {transform_indices = @transform_3, window_bounds = array<i64: 1, 3, 4, 256>}]} {
    %c0 = arith.constant 0 : index
    %c0_0 = arith.constant 0 : index
    %c0_1 = arith.constant 0 : index
    %c0_2 = arith.constant 0 : index
    %0 = vector.load %arg3[%c0, %c0_0, %c0_1, %c0_2] : memref<1x3x9x256xf32, #tpu.memory_space<vmem>>, vector<1x3x9x256xf32>
    %1 = vector.shape_cast %0 : vector<1x3x9x256xf32> to vector<3x9x256xf32>
    %2 = arith.negf %1 : vector<3x9x256xf32>
    %3 = math.exp %2 : vector<3x9x256xf32>
    %cst = arith.constant 1.000000e+00 : f32
    %4 = vector.broadcast %cst : f32 to vector<3x9x256xf32>
    %5 = arith.addf %4, %3 : vector<3x9x256xf32>
    %6 = arith.divf %4, %5 : vector<3x9x256xf32>
    %7 = vector.extract_strided_slice %1 {offsets = [0, 2, 0], sizes = [3, 2, 256], strides = [1, 1, 1]} : vector<3x9x256xf32> to vector<3x2x256xf32>
    %8 = math.exp %7 : vector<3x2x256xf32>
    %c0_3 = arith.constant 0 : index
    %c0_4 = arith.constant 0 : index
    %9 = vector.load %arg2[%c0_3, %c0_4] : memref<2x256xf32, #tpu.memory_space<vmem>>, vector<1x256xf32>
    %c1 = arith.constant 1 : index
    %c0_5 = arith.constant 0 : index
    %10 = vector.load %arg2[%c1, %c0_5] : memref<2x256xf32, #tpu.memory_space<vmem>>, vector<1x256xf32>
    %11 = vector.extract_strided_slice %6 {offsets = [0, 0, 0], sizes = [1, 1, 256], strides = [1, 1, 1]} : vector<3x9x256xf32> to vector<1x1x256xf32>
    %12 = vector.shape_cast %11 : vector<1x1x256xf32> to vector<1x256xf32>
    %cst_6 = arith.constant 1.000000e+00 : f32
    %13 = vector.broadcast %cst_6 : f32 to vector<1x256xf32>
    %14 = arith.mulf %12, %13 : vector<1x256xf32>
    %cst_7 = arith.constant 0.000000e+00 : f32
    %15 = vector.broadcast %cst_7 : f32 to vector<1x256xf32>
    %16 = arith.subf %14, %15 : vector<1x256xf32>
    %17 = arith.addf %16, %9 : vector<1x256xf32>
    %cst_8 = arith.constant 1.600000e+01 : f32
    %18 = vector.broadcast %cst_8 : f32 to vector<1x256xf32>
    %19 = arith.divf %17, %18 : vector<1x256xf32>
    %20 = vector.extract_strided_slice %6 {offsets = [0, 1, 0], sizes = [1, 1, 256], strides = [1, 1, 1]} : vector<3x9x256xf32> to vector<1x1x256xf32>
    %21 = vector.shape_cast %20 : vector<1x1x256xf32> to vector<1x256xf32>
    %cst_9 = arith.constant 1.000000e+00 : f32
    %22 = vector.broadcast %cst_9 : f32 to vector<1x256xf32>
    %23 = arith.mulf %21, %22 : vector<1x256xf32>
    %cst_10 = arith.constant 0.000000e+00 : f32
    %24 = vector.broadcast %cst_10 : f32 to vector<1x256xf32>
    %25 = arith.subf %23, %24 : vector<1x256xf32>
    %26 = arith.addf %25, %10 : vector<1x256xf32>
    %cst_11 = arith.constant 1.600000e+01 : f32
    %27 = vector.broadcast %cst_11 : f32 to vector<1x256xf32>
    %28 = arith.divf %26, %27 : vector<1x256xf32>
    %29 = vector.extract_strided_slice %8 {offsets = [0, 0, 0], sizes = [1, 1, 256], strides = [1, 1, 1]} : vector<3x2x256xf32> to vector<1x1x256xf32>
    %30 = vector.shape_cast %29 : vector<1x1x256xf32> to vector<1x256xf32>
    %cst_12 = arith.constant 1.500000e+00 : f32
    %31 = vector.broadcast %cst_12 : f32 to vector<1x256xf32>
    %32 = arith.mulf %30, %31 : vector<1x256xf32>
    %cst_13 = arith.constant 1.600000e+01 : f32
    %33 = vector.broadcast %cst_13 : f32 to vector<1x256xf32>
    %34 = arith.divf %32, %33 : vector<1x256xf32>
    %35 = vector.extract_strided_slice %8 {offsets = [0, 1, 0], sizes = [1, 1, 256], strides = [1, 1, 1]} : vector<3x2x256xf32> to vector<1x1x256xf32>
    %36 = vector.shape_cast %35 : vector<1x1x256xf32> to vector<1x256xf32>
    %cst_14 = arith.constant 2.000000e+00 : f32
    %37 = vector.broadcast %cst_14 : f32 to vector<1x256xf32>
    %38 = arith.mulf %36, %37 : vector<1x256xf32>
    %cst_15 = arith.constant 1.600000e+01 : f32
    %39 = vector.broadcast %cst_15 : f32 to vector<1x256xf32>
    %40 = arith.divf %38, %39 : vector<1x256xf32>
    %cst_16 = arith.constant 5.000000e-01 : f32
    %41 = vector.broadcast %cst_16 : f32 to vector<1x256xf32>
    %42 = arith.mulf %34, %41 : vector<1x256xf32>
    %43 = arith.subf %19, %42 : vector<1x256xf32>
    %cst_17 = arith.constant 5.000000e-01 : f32
    %44 = vector.broadcast %cst_17 : f32 to vector<1x256xf32>
    %45 = arith.mulf %40, %44 : vector<1x256xf32>
    %46 = arith.subf %28, %45 : vector<1x256xf32>
    %c0_18 = arith.constant 0 : index
    %c0_19 = arith.constant 0 : index
    %c0_20 = arith.constant 0 : index
    %c0_21 = arith.constant 0 : index
    %47 = vector.load %arg4[%c0_18, %c0_19, %c0_20, %c0_21] : memref<1x3x4x256xf32, #tpu.memory_space<vmem>>, vector<1x1x1x256xf32>
    %48 = vector.shape_cast %47 : vector<1x1x1x256xf32> to vector<1x256xf32>
    %49 = vector.shape_cast %43 : vector<1x256xf32> to vector<1x1x1x256xf32>
    tpu.vector_store %arg4[%c0_18, %c0_19, %c0_20, %c0_21], %49 {strides = array<i32>} : memref<1x3x4x256xf32, #tpu.memory_space<vmem>>, vector<1x1x1x256xf32>,
    %c0_22 = arith.constant 0 : index
    %c0_23 = arith.constant 0 : index
    %c1_24 = arith.constant 1 : index
    %c0_25 = arith.constant 0 : index
    %50 = vector.load %arg4[%c0_22, %c0_23, %c1_24, %c0_25] : memref<1x3x4x256xf32, #tpu.memory_space<vmem>>, vector<1x1x1x256xf32>
    %51 = vector.shape_cast %50 : vector<1x1x1x256xf32> to vector<1x256xf32>
    %52 = vector.shape_cast %46 : vector<1x256xf32> to vector<1x1x1x256xf32>
    tpu.vector_store %arg4[%c0_22, %c0_23, %c1_24, %c0_25], %52 {strides = array<i32>} : memref<1x3x4x256xf32, #tpu.memory_space<vmem>>, vector<1x1x1x256xf32>,
    %53 = arith.addf %43, %34 : vector<1x256xf32>
    %c0_26 = arith.constant 0 : index
    %c0_27 = arith.constant 0 : index
    %c2 = arith.constant 2 : index
    %c0_28 = arith.constant 0 : index
    %54 = vector.load %arg4[%c0_26, %c0_27, %c2, %c0_28] : memref<1x3x4x256xf32, #tpu.memory_space<vmem>>, vector<1x1x1x256xf32>
    %55 = vector.shape_cast %54 : vector<1x1x1x256xf32> to vector<1x256xf32>
    %56 = vector.shape_cast %53 : vector<1x256xf32> to vector<1x1x1x256xf32>
    tpu.vector_store %arg4[%c0_26, %c0_27, %c2, %c0_28], %56 {strides = array<i32>} : memref<1x3x4x256xf32, #tpu.memory_space<vmem>>, vector<1x1x1x256xf32>,
    %57 = arith.addf %46, %40 : vector<1x256xf32>
    %c0_29 = arith.constant 0 : index
    %c0_30 = arith.constant 0 : index
    %c3 = arith.constant 3 : index
    %c0_31 = arith.constant 0 : index
    %58 = vector.load %arg4[%c0_29, %c0_30, %c3, %c0_31] : memref<1x3x4x256xf32, #tpu.memory_space<vmem>>, vector<1x1x1x256xf32>
    %59 = vector.shape_cast %58 : vector<1x1x1x256xf32> to vector<1x256xf32>
    %60 = vector.shape_cast %57 : vector<1x256xf32> to vector<1x1x1x256xf32>
    tpu.vector_store %arg4[%c0_29, %c0_30, %c3, %c0_31], %60 {strides = array<i32>} : memref<1x3x4x256xf32, #tpu.memory_space<vmem>>, vector<1x1x1x256xf32>,
    %61 = vector.extract_strided_slice %6 {offsets = [0, 5, 0], sizes = [1, 4, 256], strides = [1, 1, 1]} : vector<3x9x256xf32> to vector<1x4x256xf32>
    %62 = vector.shape_cast %61 : vector<1x4x256xf32> to vector<4x256xf32>
    %63 = vector.extract_strided_slice %6 {offsets = [0, 4, 0], sizes = [1, 1, 256], strides = [1, 1, 1]} : vector<3x9x256xf32> to vector<1x1x256xf32>
    %64 = vector.shape_cast %63 : vector<1x1x256xf32> to vector<1x256xf32>
    %65 = vector.broadcast %64 : vector<1x256xf32> to vector<4x256xf32>
    %66 = arith.mulf %62, %65 : vector<4x256xf32>
    %c0_32 = arith.constant 0 : index
    %c0_33 = arith.constant 0 : index
    %c0_34 = arith.constant 0 : index
    %c0_35 = arith.constant 0 : index
    %67 = vector.load %arg5[%c0_32, %c0_33, %c0_34, %c0_35] : memref<1x3x4x256xf32, #tpu.memory_space<vmem>>, vector<1x1x4x256xf32>
    %68 = vector.shape_cast %67 : vector<1x1x4x256xf32> to vector<4x256xf32>
    %69 = vector.shape_cast %66 : vector<4x256xf32> to vector<1x1x4x256xf32>
    tpu.vector_store %arg5[%c0_32, %c0_33, %c0_34, %c0_35], %69 {strides = array<i32>} : memref<1x3x4x256xf32, #tpu.memory_space<vmem>>, vector<1x1x4x256xf32>,
    %70 = vector.extract_strided_slice %6 {offsets = [1, 0, 0], sizes = [1, 1, 256], strides = [1, 1, 1]} : vector<3x9x256xf32> to vector<1x1x256xf32>
    %71 = vector.shape_cast %70 : vector<1x1x256xf32> to vector<1x256xf32>
    %cst_36 = arith.constant 1.000000e+00 : f32
    %72 = vector.broadcast %cst_36 : f32 to vector<1x256xf32>
    %73 = arith.mulf %71, %72 : vector<1x256xf32>
    %cst_37 = arith.constant 0.000000e+00 : f32
    %74 = vector.broadcast %cst_37 : f32 to vector<1x256xf32>
    %75 = arith.subf %73, %74 : vector<1x256xf32>
    %76 = arith.addf %75, %9 : vector<1x256xf32>
    %cst_38 = arith.constant 1.600000e+01 : f32
    %77 = vector.broadcast %cst_38 : f32 to vector<1x256xf32>
    %78 = arith.divf %76, %77 : vector<1x256xf32>
    %79 = vector.extract_strided_slice %6 {offsets = [1, 1, 0], sizes = [1, 1, 256], strides = [1, 1, 1]} : vector<3x9x256xf32> to vector<1x1x256xf32>
    %80 = vector.shape_cast %79 : vector<1x1x256xf32> to vector<1x256xf32>
    %cst_39 = arith.constant 1.000000e+00 : f32
    %81 = vector.broadcast %cst_39 : f32 to vector<1x256xf32>
    %82 = arith.mulf %80, %81 : vector<1x256xf32>
    %cst_40 = arith.constant 0.000000e+00 : f32
    %83 = vector.broadcast %cst_40 : f32 to vector<1x256xf32>
    %84 = arith.subf %82, %83 : vector<1x256xf32>
    %85 = arith.addf %84, %10 : vector<1x256xf32>
    %cst_41 = arith.constant 1.600000e+01 : f32
    %86 = vector.broadcast %cst_41 : f32 to vector<1x256xf32>
    %87 = arith.divf %85, %86 : vector<1x256xf32>
    %88 = vector.extract_strided_slice %8 {offsets = [1, 0, 0], sizes = [1, 1, 256], strides = [1, 1, 1]} : vector<3x2x256xf32> to vector<1x1x256xf32>
    %89 = vector.shape_cast %88 : vector<1x1x256xf32> to vector<1x256xf32>
    %cst_42 = arith.constant 2.375000e+00 : f32
    %90 = vector.broadcast %cst_42 : f32 to vector<1x256xf32>
    %91 = arith.mulf %89, %90 : vector<1x256xf32>
    %cst_43 = arith.constant 1.600000e+01 : f32
    %92 = vector.broadcast %cst_43 : f32 to vector<1x256xf32>
    %93 = arith.divf %91, %92 : vector<1x256xf32>
    %94 = vector.extract_strided_slice %8 {offsets = [1, 1, 0], sizes = [1, 1, 256], strides = [1, 1, 1]} : vector<3x2x256xf32> to vector<1x1x256xf32>
    %95 = vector.shape_cast %94 : vector<1x1x256xf32> to vector<1x256xf32>
    %cst_44 = arith.constant 4.500000e+00 : f32
    %96 = vector.broadcast %cst_44 : f32 to vector<1x256xf32>
    %97 = arith.mulf %95, %96 : vector<1x256xf32>
    %cst_45 = arith.constant 1.600000e+01 : f32
    %98 = vector.broadcast %cst_45 : f32 to vector<1x256xf32>
    %99 = arith.divf %97, %98 : vector<1x256xf32>
    %cst_46 = arith.constant 5.000000e-01 : f32
    %100 = vector.broadcast %cst_46 : f32 to vector<1x256xf32>
    %101 = arith.mulf %93, %100 : vector<1x256xf32>
    %102 = arith.subf %78, %101 : vector<1x256xf32>
    %cst_47 = arith.constant 5.000000e-01 : f32
    %103 = vector.broadcast %cst_47 : f32 to vector<1x256xf32>
    %104 = arith.mulf %99, %103 : vector<1x256xf32>
    %105 = arith.subf %87, %104 : vector<1x256xf32>
    %c0_48 = arith.constant 0 : index
    %c1_49 = arith.constant 1 : index
    %c0_50 = arith.constant 0 : index
    %c0_51 = arith.constant 0 : index
    %106 = vector.load %arg4[%c0_48, %c1_49, %c0_50, %c0_51] : memref<1x3x4x256xf32, #tpu.memory_space<vmem>>, vector<1x1x1x256xf32>
    %107 = vector.shape_cast %106 : vector<1x1x1x256xf32> to vector<1x256xf32>
    %108 = vector.shape_cast %102 : vector<1x256xf32> to vector<1x1x1x256xf32>
    tpu.vector_store %arg4[%c0_48, %c1_49, %c0_50, %c0_51], %108 {strides = array<i32>} : memref<1x3x4x256xf32, #tpu.memory_space<vmem>>, vector<1x1x1x256xf32>,
    %c0_52 = arith.constant 0 : index
    %c1_53 = arith.constant 1 : index
    %c1_54 = arith.constant 1 : index
    %c0_55 = arith.constant 0 : index
    %109 = vector.load %arg4[%c0_52, %c1_53, %c1_54, %c0_55] : memref<1x3x4x256xf32, #tpu.memory_space<vmem>>, vector<1x1x1x256xf32>
    %110 = vector.shape_cast %109 : vector<1x1x1x256xf32> to vector<1x256xf32>
    %111 = vector.shape_cast %105 : vector<1x256xf32> to vector<1x1x1x256xf32>
    tpu.vector_store %arg4[%c0_52, %c1_53, %c1_54, %c0_55], %111 {strides = array<i32>} : memref<1x3x4x256xf32, #tpu.memory_space<vmem>>, vector<1x1x1x256xf32>,
    %112 = arith.addf %102, %93 : vector<1x256xf32>
    %c0_56 = arith.constant 0 : index
    %c1_57 = arith.constant 1 : index
    %c2_58 = arith.constant 2 : index
    %c0_59 = arith.constant 0 : index
    %113 = vector.load %arg4[%c0_56, %c1_57, %c2_58, %c0_59] : memref<1x3x4x256xf32, #tpu.memory_space<vmem>>, vector<1x1x1x256xf32>
    %114 = vector.shape_cast %113 : vector<1x1x1x256xf32> to vector<1x256xf32>
    %115 = vector.shape_cast %112 : vector<1x256xf32> to vector<1x1x1x256xf32>
    tpu.vector_store %arg4[%c0_56, %c1_57, %c2_58, %c0_59], %115 {strides = array<i32>} : memref<1x3x4x256xf32, #tpu.memory_space<vmem>>, vector<1x1x1x256xf32>,
    %116 = arith.addf %105, %99 : vector<1x256xf32>
    %c0_60 = arith.constant 0 : index
    %c1_61 = arith.constant 1 : index
    %c3_62 = arith.constant 3 : index
    %c0_63 = arith.constant 0 : index
    %117 = vector.load %arg4[%c0_60, %c1_61, %c3_62, %c0_63] : memref<1x3x4x256xf32, #tpu.memory_space<vmem>>, vector<1x1x1x256xf32>
    %118 = vector.shape_cast %117 : vector<1x1x1x256xf32> to vector<1x256xf32>
    %119 = vector.shape_cast %116 : vector<1x256xf32> to vector<1x1x1x256xf32>
    tpu.vector_store %arg4[%c0_60, %c1_61, %c3_62, %c0_63], %119 {strides = array<i32>} : memref<1x3x4x256xf32, #tpu.memory_space<vmem>>, vector<1x1x1x256xf32>,
    %120 = vector.extract_strided_slice %6 {offsets = [1, 5, 0], sizes = [1, 4, 256], strides = [1, 1, 1]} : vector<3x9x256xf32> to vector<1x4x256xf32>
    %121 = vector.shape_cast %120 : vector<1x4x256xf32> to vector<4x256xf32>
    %122 = vector.extract_strided_slice %6 {offsets = [1, 4, 0], sizes = [1, 1, 256], strides = [1, 1, 1]} : vector<3x9x256xf32> to vector<1x1x256xf32>
    %123 = vector.shape_cast %122 : vector<1x1x256xf32> to vector<1x256xf32>
    %124 = vector.broadcast %123 : vector<1x256xf32> to vector<4x256xf32>
    %125 = arith.mulf %121, %124 : vector<4x256xf32>
    %c0_64 = arith.constant 0 : index
    %c1_65 = arith.constant 1 : index
    %c0_66 = arith.constant 0 : index
    %c0_67 = arith.constant 0 : index
    %126 = vector.load %arg5[%c0_64, %c1_65, %c0_66, %c0_67] : memref<1x3x4x256xf32, #tpu.memory_space<vmem>>, vector<1x1x4x256xf32>
    %127 = vector.shape_cast %126 : vector<1x1x4x256xf32> to vector<4x256xf32>
    %128 = vector.shape_cast %125 : vector<4x256xf32> to vector<1x1x4x256xf32>
    tpu.vector_store %arg5[%c0_64, %c1_65, %c0_66, %c0_67], %128 {strides = array<i32>} : memref<1x3x4x256xf32, #tpu.memory_space<vmem>>, vector<1x1x4x256xf32>,
    %129 = vector.extract_strided_slice %6 {offsets = [2, 0, 0], sizes = [1, 1, 256], strides = [1, 1, 1]} : vector<3x9x256xf32> to vector<1x1x256xf32>
    %130 = vector.shape_cast %129 : vector<1x1x256xf32> to vector<1x256xf32>
    %cst_68 = arith.constant 1.000000e+00 : f32
    %131 = vector.broadcast %cst_68 : f32 to vector<1x256xf32>
    %132 = arith.mulf %130, %131 : vector<1x256xf32>
    %cst_69 = arith.constant 0.000000e+00 : f32
    %133 = vector.broadcast %cst_69 : f32 to vector<1x256xf32>
    %134 = arith.subf %132, %133 : vector<1x256xf32>
    %135 = arith.addf %134, %9 : vector<1x256xf32>
    %cst_70 = arith.constant 1.600000e+01 : f32
    %136 = vector.broadcast %cst_70 : f32 to vector<1x256xf32>
    %137 = arith.divf %135, %136 : vector<1x256xf32>
    %138 = vector.extract_strided_slice %6 {offsets = [2, 1, 0], sizes = [1, 1, 256], strides = [1, 1, 1]} : vector<3x9x256xf32> to vector<1x1x256xf32>
    %139 = vector.shape_cast %138 : vector<1x1x256xf32> to vector<1x256xf32>
    %cst_71 = arith.constant 1.000000e+00 : f32
    %140 = vector.broadcast %cst_71 : f32 to vector<1x256xf32>
    %141 = arith.mulf %139, %140 : vector<1x256xf32>
    %cst_72 = arith.constant 0.000000e+00 : f32
    %142 = vector.broadcast %cst_72 : f32 to vector<1x256xf32>
    %143 = arith.subf %141, %142 : vector<1x256xf32>
    %144 = arith.addf %143, %10 : vector<1x256xf32>
    %cst_73 = arith.constant 1.600000e+01 : f32
    %145 = vector.broadcast %cst_73 : f32 to vector<1x256xf32>
    %146 = arith.divf %144, %145 : vector<1x256xf32>
    %147 = vector.extract_strided_slice %8 {offsets = [2, 0, 0], sizes = [1, 1, 256], strides = [1, 1, 1]} : vector<3x2x256xf32> to vector<1x1x256xf32>
    %148 = vector.shape_cast %147 : vector<1x1x256xf32> to vector<1x256xf32>
    %cst_74 = arith.constant 5.000000e+00 : f32
    %149 = vector.broadcast %cst_74 : f32 to vector<1x256xf32>
    %150 = arith.mulf %148, %149 : vector<1x256xf32>
    %cst_75 = arith.constant 1.600000e+01 : f32
    %151 = vector.broadcast %cst_75 : f32 to vector<1x256xf32>
    %152 = arith.divf %150, %151 : vector<1x256xf32>
    %153 = vector.extract_strided_slice %8 {offsets = [2, 1, 0], sizes = [1, 1, 256], strides = [1, 1, 1]} : vector<3x2x256xf32> to vector<1x1x256xf32>
    %154 = vector.shape_cast %153 : vector<1x1x256xf32> to vector<1x256xf32>
    %cst_76 = arith.constant 3.500000e+00 : f32
    %155 = vector.broadcast %cst_76 : f32 to vector<1x256xf32>
    %156 = arith.mulf %154, %155 : vector<1x256xf32>
    %cst_77 = arith.constant 1.600000e+01 : f32
    %157 = vector.broadcast %cst_77 : f32 to vector<1x256xf32>
    %158 = arith.divf %156, %157 : vector<1x256xf32>
    %cst_78 = arith.constant 5.000000e-01 : f32
    %159 = vector.broadcast %cst_78 : f32 to vector<1x256xf32>
    %160 = arith.mulf %152, %159 : vector<1x256xf32>
    %161 = arith.subf %137, %160 : vector<1x256xf32>
    %cst_79 = arith.constant 5.000000e-01 : f32
    %162 = vector.broadcast %cst_79 : f32 to vector<1x256xf32>
    %163 = arith.mulf %158, %162 : vector<1x256xf32>
    %164 = arith.subf %146, %163 : vector<1x256xf32>
    %c0_80 = arith.constant 0 : index
    %c2_81 = arith.constant 2 : index
    %c0_82 = arith.constant 0 : index
    %c0_83 = arith.constant 0 : index
    %165 = vector.load %arg4[%c0_80, %c2_81, %c0_82, %c0_83] : memref<1x3x4x256xf32, #tpu.memory_space<vmem>>, vector<1x1x1x256xf32>
    %166 = vector.shape_cast %165 : vector<1x1x1x256xf32> to vector<1x256xf32>
    %167 = vector.shape_cast %161 : vector<1x256xf32> to vector<1x1x1x256xf32>
    tpu.vector_store %arg4[%c0_80, %c2_81, %c0_82, %c0_83], %167 {strides = array<i32>} : memref<1x3x4x256xf32, #tpu.memory_space<vmem>>, vector<1x1x1x256xf32>,
    %c0_84 = arith.constant 0 : index
    %c2_85 = arith.constant 2 : index
    %c1_86 = arith.constant 1 : index
    %c0_87 = arith.constant 0 : index
    %168 = vector.load %arg4[%c0_84, %c2_85, %c1_86, %c0_87] : memref<1x3x4x256xf32, #tpu.memory_space<vmem>>, vector<1x1x1x256xf32>
    %169 = vector.shape_cast %168 : vector<1x1x1x256xf32> to vector<1x256xf32>
    %170 = vector.shape_cast %164 : vector<1x256xf32> to vector<1x1x1x256xf32>
    tpu.vector_store %arg4[%c0_84, %c2_85, %c1_86, %c0_87], %170 {strides = array<i32>} : memref<1x3x4x256xf32, #tpu.memory_space<vmem>>, vector<1x1x1x256xf32>,
    %171 = arith.addf %161, %152 : vector<1x256xf32>
    %c0_88 = arith.constant 0 : index
    %c2_89 = arith.constant 2 : index
    %c2_90 = arith.constant 2 : index
    %c0_91 = arith.constant 0 : index
    %172 = vector.load %arg4[%c0_88, %c2_89, %c2_90, %c0_91] : memref<1x3x4x256xf32, #tpu.memory_space<vmem>>, vector<1x1x1x256xf32>
    %173 = vector.shape_cast %172 : vector<1x1x1x256xf32> to vector<1x256xf32>
    %174 = vector.shape_cast %171 : vector<1x256xf32> to vector<1x1x1x256xf32>
    tpu.vector_store %arg4[%c0_88, %c2_89, %c2_90, %c0_91], %174 {strides = array<i32>} : memref<1x3x4x256xf32, #tpu.memory_space<vmem>>, vector<1x1x1x256xf32>,
    %175 = arith.addf %164, %158 : vector<1x256xf32>
    %c0_92 = arith.constant 0 : index
    %c2_93 = arith.constant 2 : index
    %c3_94 = arith.constant 3 : index
    %c0_95 = arith.constant 0 : index
    %176 = vector.load %arg4[%c0_92, %c2_93, %c3_94, %c0_95] : memref<1x3x4x256xf32, #tpu.memory_space<vmem>>, vector<1x1x1x256xf32>
    %177 = vector.shape_cast %176 : vector<1x1x1x256xf32> to vector<1x256xf32>
    %178 = vector.shape_cast %175 : vector<1x256xf32> to vector<1x1x1x256xf32>
    tpu.vector_store %arg4[%c0_92, %c2_93, %c3_94, %c0_95], %178 {strides = array<i32>} : memref<1x3x4x256xf32, #tpu.memory_space<vmem>>, vector<1x1x1x256xf32>,
    %179 = vector.extract_strided_slice %6 {offsets = [2, 5, 0], sizes = [1, 4, 256], strides = [1, 1, 1]} : vector<3x9x256xf32> to vector<1x4x256xf32>
    %180 = vector.shape_cast %179 : vector<1x4x256xf32> to vector<4x256xf32>
    %181 = vector.extract_strided_slice %6 {offsets = [2, 4, 0], sizes = [1, 1, 256], strides = [1, 1, 1]} : vector<3x9x256xf32> to vector<1x1x256xf32>
    %182 = vector.shape_cast %181 : vector<1x1x256xf32> to vector<1x256xf32>
    %183 = vector.broadcast %182 : vector<1x256xf32> to vector<4x256xf32>
    %184 = arith.mulf %180, %183 : vector<4x256xf32>
    %c0_96 = arith.constant 0 : index
    %c2_97 = arith.constant 2 : index
    %c0_98 = arith.constant 0 : index
    %c0_99 = arith.constant 0 : index
    %185 = vector.load %arg5[%c0_96, %c2_97, %c0_98, %c0_99] : memref<1x3x4x256xf32, #tpu.memory_space<vmem>>, vector<1x1x4x256xf32>
    %186 = vector.shape_cast %185 : vector<1x1x4x256xf32> to vector<4x256xf32>
    %187 = vector.shape_cast %184 : vector<4x256xf32> to vector<1x1x4x256xf32>
    tpu.vector_store %arg5[%c0_96, %c2_97, %c0_98, %c0_99], %187 {strides = array<i32>} : memref<1x3x4x256xf32, #tpu.memory_space<vmem>>, vector<1x1x4x256xf32>,
    return
  }
  func.func @transform_0(%arg0: i32, %arg1: i32) -> (i32, i32) {
    %c0_i32 = arith.constant 0 : i32
    %c0_i32_0 = arith.constant 0 : i32
    return %c0_i32, %arg1 : i32, i32
  }
  func.func @transform_1(%arg0: i32, %arg1: i32) -> (i32, i32, i32, i32) {
    %c0_i32 = arith.constant 0 : i32
    %c0_i32_0 = arith.constant 0 : i32
    %c0_i32_1 = arith.constant 0 : i32
    return %arg0, %c0_i32, %c0_i32_0, %arg1 : i32, i32, i32, i32
  }
  func.func @transform_2(%arg0: i32, %arg1: i32) -> (i32, i32, i32, i32) {
    %c0_i32 = arith.constant 0 : i32
    %c0_i32_0 = arith.constant 0 : i32
    %c0_i32_1 = arith.constant 0 : i32
    return %arg0, %c0_i32, %c0_i32_0, %arg1 : i32, i32, i32, i32
  }
  func.func @transform_3(%arg0: i32, %arg1: i32) -> (i32, i32, i32, i32) {
    %c0_i32 = arith.constant 0 : i32
    %c0_i32_0 = arith.constant 0 : i32
    %c0_i32_1 = arith.constant 0 : i32
    return %arg0, %c0_i32, %c0_i32_0, %arg1 : i32, i32, i32, i32
  }
}

</mosaic_0001>

<llo_original>
// kernel: tpu_custom_call.1
$region0: #{tpu_custom_call.1}
  #allocation0 [shape = 'u32[]', space=smem, size = 0x4, offset = 0x4, fixed_abs, tag = 'smem constant byte address 0x4 - core index']
  #allocation1 [shape = 'u32[144,128]{1,0:T(1,128)}', space=vmem, size = 0x12000, scoped, tag = 'internal scratch']
  %s0 = inlined_call_operand.vmem [shape: f32[2,256], index: 0, kind: input, shape index: {}]
  %s1 = inlined_call_operand.vmem [shape: f32[2,3,9,256], index: 1, kind: input, shape index: {}]
  %s2 = inlined_call_operand.hbm [shape: f32[2,3,4,256], index: 2, kind: output, shape index: {0}]
  %s3 = inlined_call_operand.hbm [shape: f32[2,3,4,256], index: 3, kind: output, shape index: {1}]
  %4 = xla_tuple %s2, %s3
  %s5 = sld [smem:[#allocation0]]
  $region49: #{tpu_custom_call.1} parent=0
    _
  %s7 = ssub.s32 1, %s5
  %s8 = scalar_select 0, %s7, %s5
  $region1: #{tpu_custom_call.1} parent=0
    #allocation2 [shape = 'u8[24576]{0}', space=vmem, size = 0x6000, scoped, tag = 'output window, operand 0']
    #allocation3 [shape = 's32[2]{0}', space=sflag, size = 0x8, scoped, tag = 'scoped memory for tpu_custom_call.1']
    #allocation4 [shape = 'u8[24576]{0}', space=vmem, size = 0x6000, scoped, tag = 'output window, operand 1']
    #allocation5 [shape = 's32[2]{0}', space=sflag, size = 0x8, scoped, tag = 'scoped memory for tpu_custom_call.1']
    %9 = vsyncpa [#allocation3], 0
    %s10 = scalar_lea.sflag [#allocation3], 1
    %11 = vsyncpa %s10, 0
    %12 = vsyncpa [#allocation5], 0
    %s13 = scalar_lea.sflag [#allocation5], 1
    %14 = vsyncpa %s13, 0
    loop: start=0, step=1, limit=4
    $region2: #{tpu_custom_call.1} parent=1 // loop_pre_header
      _
    $region3: #{tpu_custom_call.1} parent=1 // loop_header
      %s16 = sphi 0, %s20
      %p17 = scmp.ge.s32.totalorder %s16, 4
      %s23 = sphi 0, %s35
      %s24 = sphi 0, %s31
      %s25 = sphi 0, %s23
      %s26 = sphi 0, %s24
      %s27 = sphi 0, %s25
      %s28 = sphi 0, %s26
      %s38 = sphi 0, %s40
      %s41 = sphi 0, %s38
      %s42 = sphi 0, %s41
      %s58 = sphi 0, %s42
      %s66 = sphi 0, %s68
      %s69 = sphi 0, %s66
      %s70 = sphi 0, %s69
      %s86 = sphi 0, %s70
      %s94 = sphi 0, %s96
      %s97 = sphi 0, %s94
      %s98 = sphi 0, %s97
      %s114 = sphi 0, %s98
      %s122 = sphi 0, %s124
      %s125 = sphi 0, %s122
      %s126 = sphi 0, %s125
      %s142 = sphi 0, %s126
    $region4: #{tpu_custom_call.1} parent=1 // loop_header_branch
      %19 = sbr.rel (%p17) target = $region8
    $region5: #{tpu_custom_call.1} parent=1 // loop_body
      %s21 = ssub.s32 %s16, 1
      %s22 = ssub.s32 %s16, 2
      %s29 = sadd.s32 1, %s24
      %p30 = scmp.ge.s32.totalorder %s29, 1
      %s31 = scalar_select %p30, 0, %s29
      %s32 = sadd.s32 1, %s23
      %s33 = scalar_select %p30, %s32, %s23
      %p34 = scmp.ge.s32.totalorder %s33, 2
      %s35 = scalar_select %p34, 0, %s33
      %s36 = ssub.s32 %s24, %s31
      %p37 = scmp.eq.s32.totalorder %s36, 0
      %s39 = sadd.s32 %s38, 1
      %s40 = scalar_select %p37, %s38, %s39
      %p43 = pneg %p37
      %p44 = scmp.eq.s32.totalorder %s16, 1
      %p45 = por %p43, %p44
      %p46 = scmp.ne.s32.totalorder %s38, %s41
      %p47 = scmp.eq.s32.totalorder %s16, 0
      %p48 = por %p46, %p47
      %p49 = scmp.ne.s32.totalorder %s38, %s41
      %p50 = scmp.eq.s32.totalorder %s21, 1
      %p51 = por %p49, %p50
      %p52 = scmp.ne.s32.totalorder %s41, %s42
      %p53 = scmp.eq.s32.totalorder %s21, 0
      %p54 = por %p52, %p53
      %p55 = scmp.ne.s32.totalorder %s41, %s42
      %p56 = scmp.eq.s32.totalorder %s22, 1
      %p57 = por %p55, %p56
      %p59 = scmp.ne.s32.totalorder %s42, %s58
      %p60 = scmp.eq.s32.totalorder %s22, 0
      %p61 = por %p59, %p60
      %s62 = ssub.s32 %s23, %s35
      %s63 = ssub.s32 %s24, %s31
      %s64 = sor.u32 %s62, %s63
      %p65 = scmp.eq.s32.totalorder %s64, 0
      %s67 = sadd.s32 %s66, 1
      %s68 = scalar_select %p65, %s66, %s67
      %p71 = pneg %p65
      %p72 = scmp.eq.s32.totalorder %s16, 1
      %p73 = por %p71, %p72
      %p74 = scmp.ne.s32.totalorder %s66, %s69
      %p75 = scmp.eq.s32.totalorder %s16, 0
      %p76 = por %p74, %p75
      %p77 = scmp.ne.s32.totalorder %s66, %s69
      %p78 = scmp.eq.s32.totalorder %s21, 1
      %p79 = por %p77, %p78
      %p80 = scmp.ne.s32.totalorder %s69, %s70
      %p81 = scmp.eq.s32.totalorder %s21, 0
      %p82 = por %p80, %p81
      %p83 = scmp.ne.s32.totalorder %s69, %s70
      %p84 = scmp.eq.s32.totalorder %s22, 1
      %p85 = por %p83, %p84
      %p87 = scmp.ne.s32.totalorder %s70, %s86
      %p88 = scmp.eq.s32.totalorder %s22, 0
      %p89 = por %p87, %p88
      %s90 = ssub.s32 %s23, %s35
      %s91 = ssub.s32 %s24, %s31
      %s92 = sor.u32 %s90, %s91
      %p93 = scmp.eq.s32.totalorder %s92, 0
      %s95 = sadd.s32 %s94, 1
      %s96 = scalar_select %p93, %s94, %s95
      %p99 = pneg %p93
      %p100 = scmp.eq.s32.totalorder %s16, 1
      %p101 = por %p99, %p100
      %p102 = scmp.ne.s32.totalorder %s94, %s97
      %p103 = scmp.eq.s32.totalorder %s16, 0
      %p104 = por %p102, %p103
      %p105 = scmp.ne.s32.totalorder %s94, %s97
      %p106 = scmp.eq.s32.totalorder %s21, 1
      %p107 = por %p105, %p106
      %p108 = scmp.ne.s32.totalorder %s97, %s98
      %p109 = scmp.eq.s32.totalorder %s21, 0
      %p110 = por %p108, %p109
      %p111 = scmp.ne.s32.totalorder %s97, %s98
      %p112 = scmp.eq.s32.totalorder %s22, 1
      %p113 = por %p111, %p112
      %p115 = scmp.ne.s32.totalorder %s98, %s114
      %p116 = scmp.eq.s32.totalorder %s22, 0
      %p117 = por %p115, %p116
      %s118 = ssub.s32 %s23, %s35
      %s119 = ssub.s32 %s24, %s31
      %s120 = sor.u32 %s118, %s119
      %p121 = scmp.eq.s32.totalorder %s120, 0
      %s123 = sadd.s32 %s122, 1
      %s124 = scalar_select %p121, %s122, %s123
      %p127 = pneg %p121
      %p128 = scmp.eq.s32.totalorder %s16, 1
      %p129 = por %p127, %p128
      %p130 = scmp.ne.s32.totalorder %s122, %s125
      %p131 = scmp.eq.s32.totalorder %s16, 0
      %p132 = por %p130, %p131
      %p133 = scmp.ne.s32.totalorder %s122, %s125
      %p134 = scmp.eq.s32.totalorder %s21, 1
      %p135 = por %p133, %p134
      %p136 = scmp.ne.s32.totalorder %s125, %s126
      %p137 = scmp.eq.s32.totalorder %s21, 0
      %p138 = por %p136, %p137
      %p139 = scmp.ne.s32.totalorder %s125, %s126
      %p140 = scmp.eq.s32.totalorder %s22, 1
      %p141 = por %p139, %p140
      %p143 = scmp.ne.s32.totalorder %s126, %s142
      %p144 = scmp.eq.s32.totalorder %s22, 0
      %p145 = por %p143, %p144
      %p146 = scmp.le.s32.totalorder 1, %s16
      %p147 = scmp.lt.s32.totalorder %s16, 3
      %p148 = pnand %p146, %p147
      %p149 = pneg %p148
      // Predicated region
      $region9: #{tpu_custom_call.1} parent=5 // pred_check
        _
      $region10: #{tpu_custom_call.1} parent=5 // pred_check_branch
        %151 = sbr.rel (%p148) target = $region12
      $region11: #{tpu_custom_call.1} parent=5 // pred_region
        %s152 = ssub.s32 %s16, 1
        // Predicated region
        $region13: #{tpu_custom_call.1} parent=11 // pred_check
          %p153 = pneg %p54
        $region14: #{tpu_custom_call.1} parent=11 // pred_check_branch
          %155 = sbr.rel (%p153) target = $region16
        $region15: #{tpu_custom_call.1} parent=11 // pred_region
          %s156 = smul.u32 2, %s26
          %p157 = scmp.lt.s32.totalorder %s156, 1
          %s158 = scalar_select %p157, %s156, 1
          %s159 = smul.addr %s158, 2
          %s160 = scalar_lea.vmem %s0, %s159
          %s161 = smul.u32 2, %s26
        $region16: #{tpu_custom_call.1} parent=11 // pred_fallthru
          _
      $region12: #{tpu_custom_call.1} parent=5 // pred_fallthru
        _
      %p162 = scmp.lt.s32.totalorder %s16, 2
      // Predicated region
      $region17: #{tpu_custom_call.1} parent=5 // pred_check
        %p163 = pneg %p162
      $region18: #{tpu_custom_call.1} parent=5 // pred_check_branch
        %165 = sbr.rel (%p163) target = $region20
      $region19: #{tpu_custom_call.1} parent=5 // pred_region
        // Predicated region
        $region21: #{tpu_custom_call.1} parent=19 // pred_check
          %p166 = pneg %p76
        $region22: #{tpu_custom_call.1} parent=19 // pred_check_branch
          %168 = sbr.rel (%p166) target = $region24
        $region23: #{tpu_custom_call.1} parent=19 // pred_region
          %s169 = smul.u32 2, %s24
          %p170 = scmp.lt.s32.totalorder %s23, 1
          %s171 = scalar_select %p170, %s23, 1
          %p172 = scmp.lt.s32.totalorder %s169, 1
          %s173 = scalar_select %p172, %s169, 1
          %s174 = smul.addr %s171, 12
          %s175 = sadd.s32 %s173, %s174
          %s176 = smul.addr %s175, 8
          %s177 = scalar_lea.vmem %s1, %s176
          %s178 = smul.u32 2, %s24
        $region24: #{tpu_custom_call.1} parent=19 // pred_fallthru
          _
      $region20: #{tpu_custom_call.1} parent=5 // pred_fallthru
        _
      %p179 = scmp.le.s32.totalorder 1, %s16
      %p180 = scmp.lt.s32.totalorder %s16, 3
      %p181 = pnand %p179, %p180
      %p182 = pneg %p181
      // Predicated region
      $region25: #{tpu_custom_call.1} parent=5 // pred_check
        _
      $region26: #{tpu_custom_call.1} parent=5 // pred_check_branch
        %184 = sbr.rel (%p181) target = $region28
      $region27: #{tpu_custom_call.1} parent=5 // pred_region
        %s185 = ssub.s32 %s16, 1
        %s186 = smul.u32 2, %s26
        %p187 = scmp.lt.s32.totalorder %s186, 1
        %s188 = scalar_select %p187, %s186, 1
        %s189 = smul.addr %s188, 2
        %s190 = scalar_lea.vmem %s0, %s189
        %p191 = pneg %p54
        %p192 = pneg %p51
        %s193 = smul.u32 2, %s26
        %p194 = scmp.lt.s32.totalorder %s25, 1
        %s195 = scalar_select %p194, %s25, 1
        %p196 = scmp.lt.s32.totalorder %s193, 1
        %s197 = scalar_select %p196, %s193, 1
        %s198 = smul.addr %s195, 12
        %s199 = sadd.s32 %s197, %s198
        %s200 = smul.addr %s199, 8
        %s201 = scalar_lea.vmem %s1, %s200
        %p202 = pneg %p82
        %p203 = pneg %p79
        %p204 = pneg %p110
        %p205 = pneg %p107
        %s206 = sand.u32 %s97, 1
        %s207 = scalar_lea.sflag [#allocation3], %s206
        %s208 = sand.u32 %s97, 1
        %s209 = smul.addr %s208, 24
        %s210 = scalar_lea.vmem [#allocation2], %s209
        %p211 = pneg %p138
        %p212 = pneg %p135
        %s213 = sand.u32 %s125, 1
        %s214 = scalar_lea.sflag [#allocation5], %s213
        %s215 = sand.u32 %s125, 1
        %s216 = smul.addr %s215, 24
        %s217 = scalar_lea.vmem [#allocation4], %s216
        %s218 = smul.u32 2, %s26
        %p219 = scmp.lt.s32.totalorder %s218, 1
        %s220 = scalar_select %p219, %s218, 1
        %s221 = smul.addr %s220, 2
        %s222 = scalar_lea.vmem %s0, %s221
        %s223 = smul.u32 2, %s26
        %s224 = smul.u32 2, %s26
        %p225 = scmp.lt.s32.totalorder %s25, 1
        %s226 = scalar_select %p225, %s25, 1
        %p227 = scmp.lt.s32.totalorder %s224, 1
        %s228 = scalar_select %p227, %s224, 1
        %s229 = smul.addr %s226, 12
        %s230 = sadd.s32 %s228, %s229
        %s231 = smul.addr %s230, 8
        %s232 = scalar_lea.vmem %s1, %s231
        %s233 = smul.u32 2, %s26
        %s234 = smul.u32 2, %s26
        %s235 = smul.u32 2, %s26
        %v236 = vld [vmem:[%s232] sm:$0xff]
        %v237 = vld [vmem:[%s232 + $0x8] sm:$0xff]
        %v238 = vld [vmem:[%s232 + $0x10] sm:$0x1]
        %v239 = vld [vmem:[%s232 + $0x18] sm:$0x1]
        %v240 = vld [vmem:[%s232 + $0x20] sm:$0xff]
        %v241 = vld [vmem:[%s232 + $0x28] sm:$0xff]
        %v242 = vld [vmem:[%s232 + $0x30] sm:$0x1]
        %v243 = vld [vmem:[%s232 + $0x38] sm:$0x1]
        %v244 = vld [vmem:[%s232 + $0x40] sm:$0xff]
        %v245 = vld [vmem:[%s232 + $0x48] sm:$0xff]
        %v246 = vld [vmem:[%s232 + $0x50] sm:$0x1]
        %v247 = vld [vmem:[%s232 + $0x58] sm:$0x1]
        %v248 = vxor.u32 %v236, 2147483648
        %v249 = vxor.u32 %v237, 2147483648
        %v250 = vxor.u32 %v238, 2147483648
        %v251 = vxor.u32 %v239, 2147483648
        %v252 = vxor.u32 %v240, 2147483648
        %v253 = vxor.u32 %v241, 2147483648
        %v254 = vxor.u32 %v242, 2147483648
        %v255 = vxor.u32 %v243, 2147483648
        %v256 = vxor.u32 %v244, 2147483648
        %v257 = vxor.u32 %v245, 2147483648
        %v258 = vxor.u32 %v246, 2147483648
        %v259 = vxor.u32 %v247, 2147483648
        %v260 = vmul.f32 %v248, 1.442695
        %v261 = vpow.pop %v260
        %v262 = vmul.f32 %v249, 1.442695
        %v263 = vpow.pop %v262
        %v264 = vmul.f32 %v250, 1.442695
        %v265 = vpow.pop %v264
        %v266 = vmul.f32 %v251, 1.442695
        %v267 = vpow.pop %v266
        %v268 = vmul.f32 %v252, 1.442695
        %v269 = vpow.pop %v268
        %v270 = vmul.f32 %v253, 1.442695
        %v271 = vpow.pop %v270
        %v272 = vmul.f32 %v254, 1.442695
        %v273 = vpow.pop %v272
        %v274 = vmul.f32 %v255, 1.442695
        %v275 = vpow.pop %v274
        %v276 = vmul.f32 %v256, 1.442695
        %v277 = vpow.pop %v276
        %v278 = vmul.f32 %v257, 1.442695
        %v279 = vpow.pop %v278
        %v280 = vmul.f32 %v258, 1.442695
        %v281 = vpow.pop %v280
        %v282 = vmul.f32 %v259, 1.442695
        %v283 = vpow.pop %v282
        %v284 = vadd.f32 %v261, 1.0
        %v285 = vadd.f32 %v263, 1.0
        %v286 = vadd.f32 %v265, 1.0
        %v287 = vadd.f32 %v267, 1.0
        %v288 = vadd.f32 %v269, 1.0
        %v289 = vadd.f32 %v271, 1.0
        %v290 = vadd.f32 %v273, 1.0
        %v291 = vadd.f32 %v275, 1.0
        %v292 = vadd.f32 %v277, 1.0
        %v293 = vadd.f32 %v279, 1.0
        %v294 = vadd.f32 %v281, 1.0
        %v295 = vadd.f32 %v283, 1.0
        %v296 = vrcp.pop %v284
        %v297 = vmul.f32 1.0, %v296
        %v298 = vrcp.pop %v285
        %v299 = vmul.f32 1.0, %v298
        %v300 = vrcp.pop %v286
        %v301 = vmul.f32 1.0, %v300
        %v302 = vrcp.pop %v287
        %v303 = vmul.f32 1.0, %v302
        %v304 = vrcp.pop %v288
        %v305 = vmul.f32 1.0, %v304
        %v306 = vrcp.pop %v289
        %v307 = vmul.f32 1.0, %v306
        %v308 = vrcp.pop %v290
        %v309 = vmul.f32 1.0, %v308
        %v310 = vrcp.pop %v291
        %v311 = vmul.f32 1.0, %v310
        %v312 = vrcp.pop %v292
        %v313 = vmul.f32 1.0, %v312
        %v314 = vrcp.pop %v293
        %v315 = vmul.f32 1.0, %v314
        %v316 = vrcp.pop %v294
        %v317 = vmul.f32 1.0, %v316
        %v318 = vrcp.pop %v295
        %v319 = vmul.f32 1.0, %v318
        %v320 = vmul.f32 %v236, 1.442695
        %v321 = vpow.pop %v320
        %v322 = vmul.f32 %v237, 1.442695
        %v323 = vpow.pop %v322
        %v324 = vmul.f32 %v240, 1.442695
        %v325 = vpow.pop %v324
        %v326 = vmul.f32 %v241, 1.442695
        %v327 = vpow.pop %v326
        %v328 = vmul.f32 %v244, 1.442695
        %v329 = vpow.pop %v328
        %v330 = vmul.f32 %v245, 1.442695
        %v331 = vpow.pop %v330
        %v332 = vld [vmem:[%s222] ss:$2 sm:$0x3]
        %s333 = scalar_lea.vmem %s222, 1
        %v334 = vld [vmem:[%s333] ss:$2 sm:$0x3]
        %v336 = vlaneseq
        %v337 = vshrl.u32 %v336, 7
        %v338 = vsub.s32 0, %v337
        %v339 = vrot.slane %v332, %v338
        %v340 = vlaneseq
        %v341 = vshrl.u32 %v340, 7
        %v342 = vsub.s32 1, %v341
        %v343 = vrot.slane %v332, %v342
        %v346 = vadd.f32 %v297, %v339
        %v347 = vadd.f32 %v299, %v343
        %v348 = vrcp.pop 16.0
        %v349 = vmul.f32 %v346, %v348
        %v350 = vmul.f32 %v347, %v348
        %v352 = vlaneseq
        %v353 = vshrl.u32 %v352, 7
        %v354 = vsub.s32 0, %v353
        %v355 = vrot.slane %v334, %v354
        %v356 = vlaneseq
        %v357 = vshrl.u32 %v356, 7
        %v358 = vsub.s32 1, %v357
        %v359 = vrot.slane %v334, %v358
        %v362 = vadd.f32 %v297, %v355
        %v363 = vadd.f32 %v299, %v359
        %v364 = vmul.f32 %v362, %v348
        %v365 = vmul.f32 %v363, %v348
        %v366 = vmul.f32 %v321, 1.5
        %v367 = vmul.f32 %v323, 1.5
        %v368 = vmul.f32 %v366, %v348
        %v369 = vmul.f32 %v367, %v348
        %v370 = vmul.f32 %v321, 2.0
        %v371 = vmul.f32 %v323, 2.0
        %v372 = vmul.f32 %v370, %v348
        %v373 = vmul.f32 %v371, %v348
        %v374 = vmul.f32 %v368, 0.5
        %v375 = vmul.f32 %v369, 0.5
        %v378 = vrot.slane %v374, 2
        %v379 = vrot.slane %v375, 2
        %v382 = vsub.f32 %v349, %v378
        %v383 = vsub.f32 %v350, %v379
        %v384 = vmul.f32 %v372, 0.5
        %v385 = vmul.f32 %v373, 0.5
        %v388 = vrot.slane %v384, 2
        %v389 = vrot.slane %v385, 2
        %v392 = vsub.f32 %v364, %v388
        %v393 = vsub.f32 %v365, %v389
        %v396 = vcombine.low %v382, %v383
        %v398 = vunpack.c.l.s4 1966171168
        %v399 = vunpack.c.0.s8 %v398
        %v400 = vlaneseq
        %v401 = vshrl.u32 %v400, 7
        %v402 = vsub.s32 %v399, %v401
        %v403 = vrot.slane %v396, %v402
        %v405 = vunpack.c.l.s4 1966171168
        %v406 = vunpack.c.0.s8 %v405
        %v407 = vlaneseq
        %v408 = vshrl.u32 %v407, 7
        %v409 = vsub.s32 %v406, %v408
        %v410 = vrot.slane %v403, %v409
        %v412 = vlaneseq
        %vm413 = vcmp.ge.s32.totalorder %v412, 0
        %vm414 = vcmp.lt.s32.totalorder %v412, 256
        %vm415 = vmand %vm413, %vm414
        %416 = vst.msk [vmem:[%s210] ss:$4 sm:$0x3] %vm415, %v410
        %v419 = vcombine.low %v392, %v393
        %v421 = vunpack.c.l.s4 1966171168
        %v422 = vunpack.c.0.s8 %v421
        %v423 = vlaneseq
        %v424 = vshrl.u32 %v423, 7
        %v425 = vsub.s32 %v422, %v424
        %v426 = vrot.slane %v419, %v425
        %v427 = vcombine.high %v426, %v426
        %v429 = vunpack.c.l.s4 1966171168
        %v430 = vunpack.c.0.s8 %v429
        %v431 = vlaneseq
        %v432 = vshrl.u32 %v431, 7
        %v433 = vsub.s32 %v430, %v432
        %v434 = vrot.slane %v427, %v433
        %s436 = scalar_lea.vmem %s210, 1 [#allocation2]
        %437 = vst.msk [vmem:[%s436] ss:$4 sm:$0x3] %vm415, %v434
        %v440 = vrot.slane %v368, 2
        %v441 = vrot.slane %v369, 2
        %v444 = vadd.f32 %v382, %v440
        %v445 = vadd.f32 %v383, %v441
        %v448 = vcombine.low %v444, %v445
        %v450 = vunpack.c.l.s4 1966171168
        %v451 = vunpack.c.0.s8 %v450
        %v452 = vlaneseq
        %v453 = vshrl.u32 %v452, 7
        %v454 = vsub.s32 %v451, %v453
        %v455 = vrot.slane %v448, %v454
        %v457 = vunpack.c.l.s4 1966171168
        %v458 = vunpack.c.0.s8 %v457
        %v459 = vlaneseq
        %v460 = vshrl.u32 %v459, 7
        %v461 = vsub.s32 %v458, %v460
        %v462 = vrot.slane %v455, %v461
        %s464 = scalar_lea.vmem %s210, 2 [#allocation2]
        %465 = vst.msk [vmem:[%s464] ss:$4 sm:$0x3] %vm415, %v462
        %v468 = vrot.slane %v372, 2
        %v469 = vrot.slane %v373, 2
        %v472 = vadd.f32 %v392, %v468
        %v473 = vadd.f32 %v393, %v469
        %v476 = vcombine.low %v472, %v473
        %v478 = vunpack.c.l.s4 1966171168
        %v479 = vunpack.c.0.s8 %v478
        %v480 = vlaneseq
        %v481 = vshrl.u32 %v480, 7
        %v482 = vsub.s32 %v479, %v481
        %v483 = vrot.slane %v476, %v482
        %v484 = vcombine.high %v483, %v483
        %v486 = vunpack.c.l.s4 1966171168
        %v487 = vunpack.c.0.s8 %v486
        %v488 = vlaneseq
        %v489 = vshrl.u32 %v488, 7
        %v490 = vsub.s32 %v487, %v489
        %v491 = vrot.slane %v484, %v490
        %s493 = scalar_lea.vmem %s210, 3 [#allocation2]
        %494 = vst.msk [vmem:[%s493] ss:$4 sm:$0x3] %vm415, %v491
        %v495 = vlaneseq
        %v496 = vshrl.u32 %v495, 7
        %v497 = vsub.s32 4, %v496
        %v498 = vrot.slane %v297, %v497
        %v499 = vlaneseq
        %v500 = vshrl.u32 %v499, 7
        %v501 = vsub.s32 4, %v500
        %v502 = vrot.slane %v299, %v501
        %v503 = vmul.f32 %v297, %v498
        %v504 = vmul.f32 %v299, %v502
        %v505 = vmul.f32 %v301, %v498
        %v506 = vmul.f32 %v303, %v502
        %v511 = vcombine.high %v503, %v504
        %v512 = vcombine.low %v505, %v506
        %vm513 = vcmask 1042432
        %vm514 = vcmask 1046532
        %vm515 = vmor %vm513, %vm514
        %v516 = vrot.slane %v511, 5
        %v517 = vrot.slane %v516, 4
        %v518 = vrot.slane %v512, 5
        %v519 = vsel %vm515, %v517, %v518
        %521 = vst [vmem:[%s217] sm:$0xff] %v519
        %v522 = vadd.f32 %v305, %v339
        %v523 = vadd.f32 %v307, %v343
        %v524 = vmul.f32 %v522, %v348
        %v525 = vmul.f32 %v523, %v348
        %v526 = vadd.f32 %v305, %v355
        %v527 = vadd.f32 %v307, %v359
        %v528 = vmul.f32 %v526, %v348
        %v529 = vmul.f32 %v527, %v348
        %v530 = vmul.f32 %v325, 2.375
        %v531 = vmul.f32 %v327, 2.375
        %v532 = vmul.f32 %v530, %v348
        %v533 = vmul.f32 %v531, %v348
        %v534 = vmul.f32 %v325, 4.5
        %v535 = vmul.f32 %v327, 4.5
        %v536 = vmul.f32 %v534, %v348
        %v537 = vmul.f32 %v535, %v348
        %v538 = vmul.f32 %v532, 0.5
        %v539 = vmul.f32 %v533, 0.5
        %v542 = vrot.slane %v538, 2
        %v543 = vrot.slane %v539, 2
        %v546 = vsub.f32 %v524, %v542
        %v547 = vsub.f32 %v525, %v543
        %v548 = vmul.f32 %v536, 0.5
        %v549 = vmul.f32 %v537, 0.5
        %v552 = vrot.slane %v548, 2
        %v553 = vrot.slane %v549, 2
        %v556 = vsub.f32 %v528, %v552
        %v557 = vsub.f32 %v529, %v553
        %v560 = vcombine.low %v546, %v547
        %v562 = vunpack.c.l.s4 1966171168
        %v563 = vunpack.c.0.s8 %v562
        %v564 = vlaneseq
        %v565 = vshrl.u32 %v564, 7
        %v566 = vsub.s32 %v563, %v565
        %v567 = vrot.slane %v560, %v566
        %v569 = vunpack.c.l.s4 1966171168
        %v570 = vunpack.c.0.s8 %v569
        %v571 = vlaneseq
        %v572 = vshrl.u32 %v571, 7
        %v573 = vsub.s32 %v570, %v572
        %v574 = vrot.slane %v567, %v573
        %s576 = scalar_lea.vmem %s210, 8 [#allocation2]
        %577 = vst.msk [vmem:[%s576] ss:$4 sm:$0x3] %vm415, %v574
        %v580 = vcombine.low %v556, %v557
        %v582 = vunpack.c.l.s4 1966171168
        %v583 = vunpack.c.0.s8 %v582
        %v584 = vlaneseq
        %v585 = vshrl.u32 %v584, 7
        %v586 = vsub.s32 %v583, %v585
        %v587 = vrot.slane %v580, %v586
        %v588 = vcombine.high %v587, %v587
        %v590 = vunpack.c.l.s4 1966171168
        %v591 = vunpack.c.0.s8 %v590
        %v592 = vlaneseq
        %v593 = vshrl.u32 %v592, 7
        %v594 = vsub.s32 %v591, %v593
        %v595 = vrot.slane %v588, %v594
        %s597 = scalar_lea.vmem %s576, 1 [#allocation2]
        %598 = vst.msk [vmem:[%s597] ss:$4 sm:$0x3] %vm415, %v595
        %v601 = vrot.slane %v532, 2
        %v602 = vrot.slane %v533, 2
        %v605 = vadd.f32 %v546, %v601
        %v606 = vadd.f32 %v547, %v602
        %v609 = vcombine.low %v605, %v606
        %v611 = vunpack.c.l.s4 1966171168
        %v612 = vunpack.c.0.s8 %v611
        %v613 = vlaneseq
        %v614 = vshrl.u32 %v613, 7
        %v615 = vsub.s32 %v612, %v614
        %v616 = vrot.slane %v609, %v615
        %v618 = vunpack.c.l.s4 1966171168
        %v619 = vunpack.c.0.s8 %v618
        %v620 = vlaneseq
        %v621 = vshrl.u32 %v620, 7
        %v622 = vsub.s32 %v619, %v621
        %v623 = vrot.slane %v616, %v622
        %s625 = scalar_lea.vmem %s576, 2 [#allocation2]
        %626 = vst.msk [vmem:[%s625] ss:$4 sm:$0x3] %vm415, %v623
        %v629 = vrot.slane %v536, 2
        %v630 = vrot.slane %v537, 2
        %v633 = vadd.f32 %v556, %v629
        %v634 = vadd.f32 %v557, %v630
        %v637 = vcombine.low %v633, %v634
        %v639 = vunpack.c.l.s4 1966171168
        %v640 = vunpack.c.0.s8 %v639
        %v641 = vlaneseq
        %v642 = vshrl.u32 %v641, 7
        %v643 = vsub.s32 %v640, %v642
        %v644 = vrot.slane %v637, %v643
        %v645 = vcombine.high %v644, %v644
        %v647 = vunpack.c.l.s4 1966171168
        %v648 = vunpack.c.0.s8 %v647
        %v649 = vlaneseq
        %v650 = vshrl.u32 %v649, 7
        %v651 = vsub.s32 %v648, %v650
        %v652 = vrot.slane %v645, %v651
        %s654 = scalar_lea.vmem %s576, 3 [#allocation2]
        %655 = vst.msk [vmem:[%s654] ss:$4 sm:$0x3] %vm415, %v652
        %v656 = vlaneseq
        %v657 = vshrl.u32 %v656, 7
        %v658 = vsub.s32 4, %v657
        %v659 = vrot.slane %v305, %v658
        %v660 = vlaneseq
        %v661 = vshrl.u32 %v660, 7
        %v662 = vsub.s32 4, %v661
        %v663 = vrot.slane %v307, %v662
        %v664 = vmul.f32 %v305, %v659
        %v665 = vmul.f32 %v307, %v663
        %v666 = vmul.f32 %v309, %v659
        %v667 = vmul.f32 %v311, %v663
        %v672 = vcombine.high %v664, %v665
        %v673 = vcombine.low %v666, %v667
        %v674 = vrot.slane %v672, 5
        %v675 = vrot.slane %v674, 4
        %v676 = vrot.slane %v673, 5
        %v677 = vsel %vm515, %v675, %v676
        %s679 = scalar_lea.vmem %s217, 8 [#allocation4]
        %680 = vst [vmem:[%s679] sm:$0xff] %v677
        %v681 = vadd.f32 %v313, %v339
        %v682 = vadd.f32 %v315, %v343
        %v683 = vmul.f32 %v681, %v348
        %v684 = vmul.f32 %v682, %v348
        %v685 = vadd.f32 %v313, %v355
        %v686 = vadd.f32 %v315, %v359
        %v687 = vmul.f32 %v685, %v348
        %v688 = vmul.f32 %v686, %v348
        %v689 = vmul.f32 %v329, 5.0
        %v690 = vmul.f32 %v331, 5.0
        %v691 = vmul.f32 %v689, %v348
        %v692 = vmul.f32 %v690, %v348
        %v693 = vmul.f32 %v329, 3.5
        %v694 = vmul.f32 %v331, 3.5
        %v695 = vmul.f32 %v693, %v348
        %v696 = vmul.f32 %v694, %v348
        %v697 = vmul.f32 %v691, 0.5
        %v698 = vmul.f32 %v692, 0.5
        %v701 = vrot.slane %v697, 2
        %v702 = vrot.slane %v698, 2
        %v705 = vsub.f32 %v683, %v701
        %v706 = vsub.f32 %v684, %v702
        %v707 = vmul.f32 %v695, 0.5
        %v708 = vmul.f32 %v696, 0.5
        %v711 = vrot.slane %v707, 2
        %v712 = vrot.slane %v708, 2
        %v715 = vsub.f32 %v687, %v711
        %v716 = vsub.f32 %v688, %v712
        %v719 = vcombine.low %v705, %v706
        %v721 = vunpack.c.l.s4 1966171168
        %v722 = vunpack.c.0.s8 %v721
        %v723 = vlaneseq
        %v724 = vshrl.u32 %v723, 7
        %v725 = vsub.s32 %v722, %v724
        %v726 = vrot.slane %v719, %v725
        %v728 = vunpack.c.l.s4 1966171168
        %v729 = vunpack.c.0.s8 %v728
        %v730 = vlaneseq
        %v731 = vshrl.u32 %v730, 7
        %v732 = vsub.s32 %v729, %v731
        %v733 = vrot.slane %v726, %v732
        %s735 = scalar_lea.vmem %s210, 16 [#allocation2]
        %736 = vst.msk [vmem:[%s735] ss:$4 sm:$0x3] %vm415, %v733
        %v739 = vcombine.low %v715, %v716
        %v741 = vunpack.c.l.s4 1966171168
        %v742 = vunpack.c.0.s8 %v741
        %v743 = vlaneseq
        %v744 = vshrl.u32 %v743, 7
        %v745 = vsub.s32 %v742, %v744
        %v746 = vrot.slane %v739, %v745
        %v747 = vcombine.high %v746, %v746
        %v749 = vunpack.c.l.s4 1966171168
        %v750 = vunpack.c.0.s8 %v749
        %v751 = vlaneseq
        %v752 = vshrl.u32 %v751, 7
        %v753 = vsub.s32 %v750, %v752
        %v754 = vrot.slane %v747, %v753
        %s756 = scalar_lea.vmem %s735, 1 [#allocation2]
        %757 = vst.msk [vmem:[%s756] ss:$4 sm:$0x3] %vm415, %v754
        %v760 = vrot.slane %v691, 2
        %v761 = vrot.slane %v692, 2
        %v764 = vadd.f32 %v705, %v760
        %v765 = vadd.f32 %v706, %v761
        %v768 = vcombine.low %v764, %v765
        %v770 = vunpack.c.l.s4 1966171168
        %v771 = vunpack.c.0.s8 %v770
        %v772 = vlaneseq
        %v773 = vshrl.u32 %v772, 7
        %v774 = vsub.s32 %v771, %v773
        %v775 = vrot.slane %v768, %v774
        %v777 = vunpack.c.l.s4 1966171168
        %v778 = vunpack.c.0.s8 %v777
        %v779 = vlaneseq
        %v780 = vshrl.u32 %v779, 7
        %v781 = vsub.s32 %v778, %v780
        %v782 = vrot.slane %v775, %v781
        %s784 = scalar_lea.vmem %s735, 2 [#allocation2]
        %785 = vst.msk [vmem:[%s784] ss:$4 sm:$0x3] %vm415, %v782
        %v788 = vrot.slane %v695, 2
        %v789 = vrot.slane %v696, 2
        %v792 = vadd.f32 %v715, %v788
        %v793 = vadd.f32 %v716, %v789
        %v796 = vcombine.low %v792, %v793
        %v798 = vunpack.c.l.s4 1966171168
        %v799 = vunpack.c.0.s8 %v798
        %v800 = vlaneseq
        %v801 = vshrl.u32 %v800, 7
        %v802 = vsub.s32 %v799, %v801
        %v803 = vrot.slane %v796, %v802
        %v804 = vcombine.high %v803, %v803
        %v806 = vunpack.c.l.s4 1966171168
        %v807 = vunpack.c.0.s8 %v806
        %v808 = vlaneseq
        %v809 = vshrl.u32 %v808, 7
        %v810 = vsub.s32 %v807, %v809
        %v811 = vrot.slane %v804, %v810
        %s813 = scalar_lea.vmem %s735, 3 [#allocation2]
        %814 = vst.msk [vmem:[%s813] ss:$4 sm:$0x3] %vm415, %v811
        %v815 = vlaneseq
        %v816 = vshrl.u32 %v815, 7
        %v817 = vsub.s32 4, %v816
        %v818 = vrot.slane %v313, %v817
        %v819 = vlaneseq
        %v820 = vshrl.u32 %v819, 7
        %v821 = vsub.s32 4, %v820
        %v822 = vrot.slane %v315, %v821
        %v823 = vmul.f32 %v313, %v818
        %v824 = vmul.f32 %v315, %v822
        %v825 = vmul.f32 %v317, %v818
        %v826 = vmul.f32 %v319, %v822
        %v831 = vcombine.high %v823, %v824
        %v832 = vcombine.low %v825, %v826
        %v833 = vrot.slane %v831, 5
        %v834 = vrot.slane %v833, 4
        %v835 = vrot.slane %v832, 5
        %v836 = vsel %vm515, %v834, %v835
        %s838 = scalar_lea.vmem %s217, 16 [#allocation4]
        %839 = vst [vmem:[%s838] sm:$0xff] %v836
        %s840 = sand.u32 %s97, 1
        %s841 = scalar_lea.sflag [#allocation3], %s840
        %s842 = sand.u32 %s97, 1
        %s843 = smul.addr %s842, 24
        %s844 = scalar_lea.vmem [#allocation2], %s843
        %s845 = sand.u32 %s125, 1
        %s846 = scalar_lea.sflag [#allocation5], %s845
        %s847 = sand.u32 %s125, 1
        %s848 = smul.addr %s847, 24
        %s849 = scalar_lea.vmem [#allocation4], %s848
        // Predicated region
        $region29: #{tpu_custom_call.1} parent=27 // pred_check
          %p850 = pneg %p107
        $region30: #{tpu_custom_call.1} parent=27 // pred_check_branch
          %852 = sbr.rel (%p850) target = $region32
        $region31: #{tpu_custom_call.1} parent=27 // pred_region
          %s853 = smul.u32 2, %s26
          %s855 = ssub.s32 384, 384
          %856 = vsyncadd %s841, %s855
          %s857 = smul.addr %s25, 6
          %s858 = sadd.s32 %s853, %s857
          %s859 = smul.addr %s858, 64
          %s860 = scalar_lea.hbm %s2, %s859
          %s861 = sshll.u32 %s844, 4
          %s862 = int_to_ptr.vmem [resolvable:$true] %s861
          %867 = dma.vmem_to_hbm [thread:$0]  %s862, 384, %s860, %s841, 128, 128, 8
        $region32: #{tpu_custom_call.1} parent=27 // pred_fallthru
          _
        // Predicated region
        $region33: #{tpu_custom_call.1} parent=27 // pred_check
          %p868 = pneg %p135
        $region34: #{tpu_custom_call.1} parent=27 // pred_check_branch
          %870 = sbr.rel (%p868) target = $region36
        $region35: #{tpu_custom_call.1} parent=27 // pred_region
          %s871 = smul.u32 2, %s26
          %s873 = ssub.s32 384, 384
          %874 = vsyncadd %s846, %s873
          %s875 = smul.addr %s25, 6
          %s876 = sadd.s32 %s871, %s875
          %s877 = smul.addr %s876, 64
          %s878 = scalar_lea.hbm %s3, %s877
          %s879 = sshll.u32 %s849, 4
          %s880 = int_to_ptr.vmem [resolvable:$true] %s879
          %885 = dma.vmem_to_hbm [thread:$0]  %s880, 384, %s878, %s846, 128, 128, 8
        $region36: #{tpu_custom_call.1} parent=27 // pred_fallthru
          _
      $region28: #{tpu_custom_call.1} parent=5 // pred_fallthru
        _
      %p886 = scmp.le.s32.totalorder 2, %s16
      // Predicated region
      $region37: #{tpu_custom_call.1} parent=5 // pred_check
        %p887 = pneg %p886
      $region38: #{tpu_custom_call.1} parent=5 // pred_check_branch
        %889 = sbr.rel (%p887) target = $region40
      $region39: #{tpu_custom_call.1} parent=5 // pred_region
        %s890 = ssub.s32 %s16, 2
        // Predicated region
        $region41: #{tpu_custom_call.1} parent=39 // pred_check
          %p891 = pneg %p113
        $region42: #{tpu_custom_call.1} parent=39 // pred_check_branch
          %893 = sbr.rel (%p891) target = $region44
        $region43: #{tpu_custom_call.1} parent=39 // pred_region
          %s894 = sand.u32 %s98, 1
          %s895 = scalar_lea.sflag [#allocation3], %s894
          %s896 = sand.u32 %s98, 1
          %s897 = smul.addr %s896, 24
          %s898 = scalar_lea.vmem [#allocation2], %s897
          %899 = dma.done %s895, 384
        $region44: #{tpu_custom_call.1} parent=39 // pred_fallthru
          _
        // Predicated region
        $region45: #{tpu_custom_call.1} parent=39 // pred_check
          %p900 = pneg %p141
        $region46: #{tpu_custom_call.1} parent=39 // pred_check_branch
          %902 = sbr.rel (%p900) target = $region48
        $region47: #{tpu_custom_call.1} parent=39 // pred_region
          %s903 = sand.u32 %s126, 1
          %s904 = scalar_lea.sflag [#allocation5], %s903
          %s905 = sand.u32 %s126, 1
          %s906 = smul.addr %s905, 24
          %s907 = scalar_lea.vmem [#allocation4], %s906
          %908 = dma.done %s904, 384
        $region48: #{tpu_custom_call.1} parent=39 // pred_fallthru
          _
      $region40: #{tpu_custom_call.1} parent=5 // pred_fallthru
        _
    $region6: #{tpu_custom_call.1} parent=1 // loop_footer
      %s20 = sadd.s32 1, %s16
    $region7: #{tpu_custom_call.1} parent=1 // loop_footer_branch
      %15 = sbr.rel target = $region3
    $region8: #{tpu_custom_call.1} parent=1 // loop_exit
      _
    %909 = vsyncpa [#allocation3], 1
    %s910 = scalar_lea.sflag [#allocation3], 1
    %911 = vsyncpa %s910, 1
    %912 = vsyncpa [#allocation5], 1
    %s913 = scalar_lea.sflag [#allocation5], 1
    %914 = vsyncpa %s913, 1

</llo_original>
